<compile_context>
chip_gen: v7x
topology: tpu7x:2x2x1
jax: 0.10.0
libtpu: 0.0.40
codegen_flags: <defaults>
</compile_context>

<pallas_src>
import jax
import jax.numpy as jnp
from jax import lax
from jax.experimental import pallas as pl
from jax.experimental.pallas import tpu as pltpu

D_HIDDEN = 20            # logical hidden width of the PyTorch module
D_PAD = 128              # lane-dense padded hidden width
W3_ROWS = 8              # W3^T replicated over 8 sublanes (lane-dense layer 3)
OFF_W3 = D_PAD           # row offset of W3^T block inside the f32 slab
OFF_B = D_PAD + W3_ROWS  # row offset of the bias rows inside the f32 slab
REST_ROWS = D_PAD + W3_ROWS + 8   # [W2 (128) | W3^T x8 | b1,b2,b3 + pad (8)]


def _round_up(x, m):
    return (x + m - 1) // m * m


def _vmem_capacity_bytes():
    """Physical VMEM of the local TPU generation, with a conservative fallback."""
    try:
        info = pltpu.get_tpu_info()
        for attr in ("vmem_capacity_bytes", "vmem_size_bytes", "vmem_bytes"):
            v = getattr(info, attr, None)
            if v:
                return int(v)
    except Exception:
        pass
    return 64 << 20          # v7x per-TC physical VMEM: safe lower bound everywhere


def _mlp_kernel(x_ref, w1_ref, wr_ref, o_ref):
    """Fused 3-layer MLP forward on one batch tile.

    x_ref : [tb, d_in_p]        (x dtype: f32 or bf16)
    w1_ref: [d_in_p, 128]       (x dtype) zero-padded W1
    wr_ref: [144, 128] float32  resident slab: W2 | W3^T (x8) | b1,b2,b3 rows
    o_ref : [1, 8, tb] float32  lane-dense output block (batch on lanes)
    """
    x = x_ref[...]                                    # [tb, d_in_p]
    w1 = w1_ref[...]                                  # [d_in_p, 128]
    w2 = wr_ref[0:D_PAD, :]                           # [128, 128] f32
    w3t = wr_ref[OFF_W3:OFF_W3 + W3_ROWS, :]          # [8, 128] f32 (rows identical)
    b1 = wr_ref[OFF_B:OFF_B + 1, :]                   # [1, 128] f32
    b2 = wr_ref[OFF_B + 1:OFF_B + 2, :]               # [1, 128] f32
    b3 = wr_ref[OFF_B + 2:OFF_B + 3, 0:1]             # [1, 1]   f32

    # Layer 1 + ReLU: MXU dot in x.dtype, f32 accumulation, f32 bias.
    h1 = jnp.dot(x, w1, preferred_element_type=jnp.float32) + b1
    h1 = jnp.maximum(h1, 0.0)                         # [tb, 128] f32

    # Layer 2 + ReLU: pure f32 dot on the f32 accumulator (no casts).
    h2 = jnp.dot(h1, w2, preferred_element_type=jnp.float32) + b2
    h2 = jnp.maximum(h2, 0.0)                         # [tb, 128] f32

    # Layer 3, lane-dense: y[r, b] = sum_k W3[k] * h2[b, k]  (all 8 rows equal).
    # Contract dim 1 of both operands (A @ B^T, the q@k^T pattern) -> [8, tb].
    y = lax.dot_general(w3t, h2, (((1,), (1,)), ((), ())),
                        preferred_element_type=jnp.float32) + b3

    o_ref[0] = y.astype(o_ref.dtype)                  # unmasked lane-dense store


def _pack_weights(params, d_in_p, x_dtype):
    """Pack weights into (W1 slab in x.dtype) + (resident f32 slab)."""
    w1, b1, w2, b2, w3, b3 = params

    def pad2(a, rows, cols):
        a = a.astype(jnp.float32)
        return jnp.pad(a, ((0, rows - a.shape[0]), (0, cols - a.shape[1])))

    w1p = pad2(w1, d_in_p, D_PAD).astype(x_dtype)            # [d_in_p, 128]
    w2p = pad2(w2, D_PAD, D_PAD)                             # [128, 128]
    w3t = jnp.tile(pad2(w3.T, 1, D_PAD), (W3_ROWS, 1))       # [8, 128], rows identical
    bias = jnp.concatenate(
        [pad2(b1, 1, D_PAD), pad2(b2, 1, D_PAD), pad2(b3, 1, D_PAD),
         jnp.zeros((5, D_PAD), jnp.float32)], axis=0)        # [8, 128]
    rest = jnp.concatenate([w2p, w3t, bias], axis=0)         # [144, 128] f32
    return w1p, rest


def mlp_forward(x, params, *, max_tb=32768):
    """x: [B, d_input] (f32 or natively-bf16) -> [B, 1] float32."""
    B, d_input = x.shape
    itemsize_x = jnp.dtype(x.dtype).itemsize

    # ---- feature-dim alignment (usually a no-op; zero columns are inert) ----
    align = max(8, 32 // itemsize_x)          # f32: 8 rows, bf16: 16 rows
    d_in_p = _round_up(d_input, align)
    if d_in_p != d_input:
        # Costs one extra pass over x; only taken for unaligned d_input.
        x = jnp.pad(x, ((0, 0), (0, d_in_p - d_input)))

    w1p, wrest = _pack_weights(params, d_in_p, x.dtype)

    # ---- per-generation VMEM budget & batch-tile selection -------------------
    vmem_cap = _vmem_capacity_bytes()
    # ~96 MiB on v5e/v6e (128 MiB physical), ~48 MiB on v7x (64 MiB physical).
    vmem_limit = min((vmem_cap * 3) // 4, 100 << 20)

    lanes_x = _round_up(d_in_p, 128)          # x tile pads its lane dim in VMEM
    per_row = (2 * lanes_x * itemsize_x       # x tile, double buffered
               + 4 * D_PAD * 4                # f32 h1/h2 (+ relayout temps) margin
               + 2 * 8 * 4)                   # (1, 8, tb) f32 out block, x2
    slab_bytes = 2 * d_in_p * D_PAD * itemsize_x + 2 * REST_ROWS * D_PAD * 4
    tile_budget = max((vmem_limit * 7) // 8 - slab_bytes - (2 << 20), 64 * per_row)

    Bp = _round_up(B, 8)
    tb = tile_budget // per_row
    tb = min(tb, max_tb, Bp)
    if Bp >= 4 * 1024:
        # Keep >= 4 grid steps: 2 per TensorCore on v7x, and pipeline overlap
        # within each core on every generation.
        tb = min(tb, -(-Bp // 4))
    tb = max(8, (tb // 8) * 8)
    num_tiles = -(-B // tb)
    # TODO(synk): for very large d_input, add a K-tiling grid axis over W1/x
    # (f32 accumulator scratch) instead of keeping the whole W1 slab resident.

    cost = pl.CostEstimate(
        flops=2 * B * (d_in_p * D_PAD + D_PAD * D_PAD + D_PAD * W3_ROWS),
        transcendentals=0,
        bytes_accessed=int(B * d_in_p * itemsize_x + num_tiles * 8 * tb * 4
                           + d_in_p * D_PAD * itemsize_x + REST_ROWS * D_PAD * 4))

    out = pl.pallas_call(
        _mlp_kernel,
        out_shape=jax.ShapeDtypeStruct((num_tiles, 8, tb), jnp.float32),
        grid_spec=pltpu.PrefetchScalarGridSpec(
            num_scalar_prefetch=0,
            grid=(num_tiles,),
            in_specs=[
                pl.BlockSpec((tb, d_in_p), lambda i: (i, 0)),        # x batch tile
                pl.BlockSpec((d_in_p, D_PAD), lambda i: (0, 0)),     # W1 (resident)
                pl.BlockSpec((REST_ROWS, D_PAD), lambda i: (0, 0)),  # W2/W3/bias f32
            ],
            out_specs=pl.BlockSpec((1, 8, tb), lambda i: (i, 0, 0)),  # lane-dense
        ),
        compiler_params=pltpu.CompilerParams(
            dimension_semantics=("parallel",),          # megacore-shardable on v7x
            vmem_limit_bytes=int(vmem_limit)),
        cost_estimate=cost,
    )(x, w1p, wrest)

    # All 8 sublane rows of each tile hold the same result; take row 0.
    return out[:, 0, :].reshape(-1, 1)[:B]


def init_params(key, d_input, d_hidden=D_HIDDEN):
    """Deterministic PyTorch-style (Kaiming-uniform-ish) init, stored as [in, out]."""
    ks = jax.random.split(key, 6)

    def linear(kw, kb, fan_in, fan_out):
        bound = 1.0 / jnp.sqrt(fan_in)
        w = jax.random.uniform(kw, (fan_in, fan_out), jnp.float32, -bound, bound)
        b = jax.random.uniform(kb, (1, fan_out), jnp.float32, -bound, bound)
        return w, b

    w1, b1 = linear(ks[0], ks[1], d_input, d_hidden)
    w2, b2 = linear(ks[2], ks[3], d_hidden, d_hidden)
    w3, b3 = linear(ks[4], ks[5], d_hidden, 1)
    return (w1, b1, w2, b2, w3, b3)


def mlp_reference(x, params):
    w1, b1, w2, b2, w3, b3 = params
    h1 = jnp.maximum(x @ w1 + b1, 0.0)
    h2 = jnp.maximum(h1 @ w2 + b2, 0.0)
    return h2 @ w3 + b3


if __name__ == "__main__":
    key = jax.random.PRNGKey(0)
    k_x, k_p, k_x2 = jax.random.split(key, 3)

    d_input = 32
    params = init_params(k_p, d_input)

    # --- small-shape smoke test (single tile, grid=1) -----------------------
    B = 8
    x = jax.random.normal(k_x, (B, d_input), dtype=jnp.float32)
    y = jax.block_until_ready(mlp_forward(x, params))
    y_ref = mlp_reference(x, params)
    assert y.shape == (B, 1)
    assert jnp.allclose(y, y_ref, atol=1e-5, rtol=1e-5), "f32 small-batch mismatch"

    # --- larger batch: multi-step pipelined grid + ragged last tile ---------
    B2 = 5000
    x2 = jax.random.normal(k_x2, (B2, d_input), dtype=jnp.float32)
    y2 = jax.block_until_ready(mlp_forward(x2, params))
    y2_ref = mlp_reference(x2, params)
    assert y2.shape == (B2, 1)
    assert jnp.allclose(y2, y2_ref, atol=1e-4, rtol=1e-4), "f32 large-batch mismatch"

    # --- bf16 fast path: x natively bf16 in HBM, W2/W3/biases stay f32 ------
    x2_bf16 = x2.astype(jnp.bfloat16)     # simulates data that already lives in bf16
    y2_bf16 = jax.block_until_ready(mlp_forward(x2_bf16, params))
    assert y2_bf16.shape == (B2, 1)
    assert jnp.allclose(y2_bf16, y2_ref, atol=1e-1, rtol=1e-1), "bf16 path mismatch"

    print("KERNEL_OK")
</pallas_src>

<mosaic_0001>
module attributes {stable_mosaic.version = 11 : i64} {
  func.func @_mlp_kernel(%arg0: i32, %arg1: memref<8x32xf32, #tpu.memory_space<vmem>>, %arg2: memref<32x128xf32, #tpu.memory_space<vmem>>, %arg3: memref<144x128xf32, #tpu.memory_space<vmem>>, %arg4: memref<1x8x8xf32, #tpu.memory_space<vmem>>) attributes {dimension_semantics = [#tpu.dimension_semantics<parallel>], iteration_bounds = array<i64: 1>, scalar_prefetch = 0 : i64, scratch_operands = 0 : i64, tpu.core_type = #tpu.core_type<tc>, window_params = [{transform_indices = @transform_0, window_bounds = array<i64: 8, 32>}, {pipeline_mode = #tpu.pipeline_mode<synchronous>, transform_indices = @transform_1, window_bounds = array<i64: 32, 128>}, {pipeline_mode = #tpu.pipeline_mode<synchronous>, transform_indices = @transform_2, window_bounds = array<i64: 144, 128>}, {transform_indices = @transform_3, window_bounds = array<i64: 1, 8, 8>}]} {
    %c0 = arith.constant 0 : index
    %c0_0 = arith.constant 0 : index
    %0 = vector.load %arg1[%c0, %c0_0] : memref<8x32xf32, #tpu.memory_space<vmem>>, vector<8x32xf32>
    %c0_1 = arith.constant 0 : index
    %c0_2 = arith.constant 0 : index
    %1 = vector.load %arg2[%c0_1, %c0_2] : memref<32x128xf32, #tpu.memory_space<vmem>>, vector<32x128xf32>
    %c0_3 = arith.constant 0 : index
    %c0_4 = arith.constant 0 : index
    %2 = vector.load %arg3[%c0_3, %c0_4] : memref<144x128xf32, #tpu.memory_space<vmem>>, vector<128x128xf32>
    %c128 = arith.constant 128 : index
    %c0_5 = arith.constant 0 : index
    %3 = vector.load %arg3[%c128, %c0_5] : memref<144x128xf32, #tpu.memory_space<vmem>>, vector<8x128xf32>
    %c136 = arith.constant 136 : index
    %c0_6 = arith.constant 0 : index
    %4 = vector.load %arg3[%c136, %c0_6] : memref<144x128xf32, #tpu.memory_space<vmem>>, vector<1x128xf32>
    %c137 = arith.constant 137 : index
    %c0_7 = arith.constant 0 : index
    %5 = vector.load %arg3[%c137, %c0_7] : memref<144x128xf32, #tpu.memory_space<vmem>>, vector<1x128xf32>
    %c138 = arith.constant 138 : index
    %c0_8 = arith.constant 0 : index
    %6 = vector.load %arg3[%c138, %c0_8] : memref<144x128xf32, #tpu.memory_space<vmem>>, vector<1x1xf32>
    %cst = arith.constant dense<0.000000e+00> : vector<8x128xf32>
    %7 = tpu.matmul %0, %1, %cst {dimension_numbers = #tpu.dot_dimension_numbers<[1], [0], [0], [1], [0, 0, 1, 1], [], []>} : vector<8x32xf32>, vector<32x128xf32>, vector<8x128xf32> -> vector<8x128xf32>
    %8 = vector.broadcast %4 : vector<1x128xf32> to vector<8x128xf32>
    %9 = arith.addf %7, %8 : vector<8x128xf32>
    %cst_9 = arith.constant 0.000000e+00 : f32
    %10 = vector.broadcast %cst_9 : f32 to vector<8x128xf32>
    %11 = arith.maximumf %9, %10 : vector<8x128xf32>
    %cst_10 = arith.constant dense<0.000000e+00> : vector<8x128xf32>
    %12 = tpu.matmul %11, %2, %cst_10 {dimension_numbers = #tpu.dot_dimension_numbers<[1], [0], [0], [1], [0, 0, 1, 1], [], []>} : vector<8x128xf32>, vector<128x128xf32>, vector<8x128xf32> -> vector<8x128xf32>
    %13 = vector.broadcast %5 : vector<1x128xf32> to vector<8x128xf32>
    %14 = arith.addf %12, %13 : vector<8x128xf32>
    %cst_11 = arith.constant 0.000000e+00 : f32
    %15 = vector.broadcast %cst_11 : f32 to vector<8x128xf32>
    %16 = arith.maximumf %14, %15 : vector<8x128xf32>
    %cst_12 = arith.constant dense<0.000000e+00> : vector<8x8xf32>
    %17 = tpu.matmul %3, %16, %cst_12 {dimension_numbers = #tpu.dot_dimension_numbers<[1], [1], [0], [0], [0, 0, 1, 0], [], []>} : vector<8x128xf32>, vector<8x128xf32>, vector<8x8xf32> -> vector<8x8xf32>
    %18 = vector.broadcast %6 : vector<1x1xf32> to vector<8x8xf32>
    %19 = arith.addf %17, %18 : vector<8x8xf32>
    %c0_13 = arith.constant 0 : index
    %c0_14 = arith.constant 0 : index
    %c0_15 = arith.constant 0 : index
    %20 = vector.load %arg4[%c0_13, %c0_14, %c0_15] : memref<1x8x8xf32, #tpu.memory_space<vmem>>, vector<1x8x8xf32>
    %21 = vector.shape_cast %20 : vector<1x8x8xf32> to vector<8x8xf32>
    %22 = vector.shape_cast %19 : vector<8x8xf32> to vector<1x8x8xf32>
    tpu.vector_store %arg4[%c0_13, %c0_14, %c0_15], %22 {strides = array<i32>} : memref<1x8x8xf32, #tpu.memory_space<vmem>>, vector<1x8x8xf32>,
    return
  }
  func.func @transform_0(%arg0: i32) -> (i32, i32) {
    %c0_i32 = arith.constant 0 : i32
    %c0_i32_0 = arith.constant 0 : i32
    return %arg0, %c0_i32 : i32, i32
  }
  func.func @transform_1(%arg0: i32) -> (i32, i32) {
    %c0_i32 = arith.constant 0 : i32
    %c0_i32_0 = arith.constant 0 : i32
    %c0_i32_1 = arith.constant 0 : i32
    return %c0_i32, %c0_i32_0 : i32, i32
  }
  func.func @transform_2(%arg0: i32) -> (i32, i32) {
    %c0_i32 = arith.constant 0 : i32
    %c0_i32_0 = arith.constant 0 : i32
    %c0_i32_1 = arith.constant 0 : i32
    return %c0_i32, %c0_i32_0 : i32, i32
  }
  func.func @transform_3(%arg0: i32) -> (i32, i32, i32) {
    %c0_i32 = arith.constant 0 : i32
    %c0_i32_0 = arith.constant 0 : i32
    %c0_i32_1 = arith.constant 0 : i32
    return %arg0, %c0_i32, %c0_i32_0 : i32, i32, i32
  }
}

</mosaic_0001>

<llo_original>
// kernel: tpu_custom_call.1
$region0: #{tpu_custom_call.1}
  #allocation0 [shape = 'u32[]', space=smem, size = 0x4, offset = 0x4, fixed_abs, tag = 'smem constant byte address 0x4 - core index']
  #allocation1 [shape = 'u32[144,128]{1,0:T(1,128)}', space=vmem, size = 0x12000, scoped, tag = 'internal scratch']
  %s0 = inlined_call_operand.hbm [shape: f32[8,32], index: 0, kind: input, shape index: {}]
  %s1 = inlined_call_operand.hbm [shape: f32[32,128], index: 1, kind: input, shape index: {}]
  %s2 = inlined_call_operand.hbm [shape: f32[144,128], index: 2, kind: input, shape index: {}]
  %s3 = inlined_call_operand.hbm [shape: f32[1,8,8], index: 3, kind: output, shape index: {}]
  %s4 = sld [smem:[#allocation0]]
  $region34: #{tpu_custom_call.1} parent=0
    _
  %s6 = ssub.s32 1, %s4
  %s7 = scalar_select 0, %s6, %s4
  $region1: #{tpu_custom_call.1} parent=0
    #allocation2 [shape = 'u8[4096]{0}', space=vmem, size = 0x1000, scoped, tag = 'input window, operand 0, single buffered']
    #allocation3 [shape = 's32[1]{0}', space=sflag, size = 0x4, scoped, tag = 'scoped memory for tpu_custom_call.1']
    #allocation4 [shape = 's32[1]{0}', space=sflag, size = 0x4, scoped, tag = 'scoped memory for tpu_custom_call.1']
    #allocation5 [shape = 'u8[16384]{0}', space=vmem, size = 0x4000, scoped, tag = 'input window, operand 1, single buffered']
    #allocation6 [shape = 's32[1]{0}', space=sflag, size = 0x4, scoped, tag = 'scoped memory for tpu_custom_call.1']
    #allocation7 [shape = 'u8[73728]{0}', space=vmem, size = 0x12000, scoped, tag = 'input window, operand 2, single buffered']
    #allocation8 [shape = 'u8[4096]{0}', space=vmem, size = 0x1000, scoped, tag = 'output window, operand 0, single buffered']
    %8 = vsyncpa [#allocation3], 0
    %9 = vsyncpa [#allocation6], 0
    %10 = vsyncpa [#allocation4], 0
    // Predicated region
    $region2: #{tpu_custom_call.1} parent=1 // pred_check
      _
    $region3: #{tpu_custom_call.1} parent=1 // pred_check_branch
      %12 = sbr.rel (0) target = $region5
    $region4: #{tpu_custom_call.1} parent=1 // pred_region
      %s14 = ssub.s32 128, 128
      %15 = vsyncadd [#allocation3], %s14
      %s17 = sshll.u32 [#allocation2], 4
      %s18 = int_to_ptr.vmem [resolvable:$true] %s17
      %20 = dma.hbm_to_vmem [thread:$0]  %s0, 128, %s18, [#allocation3]
    $region5: #{tpu_custom_call.1} parent=1 // pred_fallthru
      _
    // Predicated region
    $region6: #{tpu_custom_call.1} parent=1 // pred_check
      _
    $region7: #{tpu_custom_call.1} parent=1 // pred_check_branch
      %22 = sbr.rel (0) target = $region9
    $region8: #{tpu_custom_call.1} parent=1 // pred_region
      %s24 = ssub.s32 512, 512
      %25 = vsyncadd [#allocation6], %s24
      %s26 = sshll.u32 [#allocation5], 4
      %s27 = int_to_ptr.vmem [resolvable:$true] %s26
      %32 = dma.hbm_to_vmem [thread:$0]  %s1, 512, %s27, [#allocation6], 128, 128, 8
    $region9: #{tpu_custom_call.1} parent=1 // pred_fallthru
      _
    // Predicated region
    $region10: #{tpu_custom_call.1} parent=1 // pred_check
      _
    $region11: #{tpu_custom_call.1} parent=1 // pred_check_branch
      %34 = sbr.rel (0) target = $region13
    $region12: #{tpu_custom_call.1} parent=1 // pred_region
      %s36 = ssub.s32 2304, 2304
      %37 = vsyncadd [#allocation6], %s36
      %s38 = sshll.u32 [#allocation7], 4
      %s39 = int_to_ptr.vmem [resolvable:$true] %s38
      %44 = dma.hbm_to_vmem [thread:$0]  %s2, 2304, %s39, [#allocation6], 128, 128, 8
    $region13: #{tpu_custom_call.1} parent=1 // pred_fallthru
      _
    // Predicated region
    $region14: #{tpu_custom_call.1} parent=1 // pred_check
      _
    $region15: #{tpu_custom_call.1} parent=1 // pred_check_branch
      %46 = sbr.rel (0) target = $region17
    $region16: #{tpu_custom_call.1} parent=1 // pred_region
      %47 = dma.done [#allocation3], 128
    $region17: #{tpu_custom_call.1} parent=1 // pred_fallthru
      _
    // Predicated region
    $region18: #{tpu_custom_call.1} parent=1 // pred_check
      _
    $region19: #{tpu_custom_call.1} parent=1 // pred_check_branch
      %49 = sbr.rel (0) target = $region21
    $region20: #{tpu_custom_call.1} parent=1 // pred_region
      %50 = dma.done [#allocation6], 512
    $region21: #{tpu_custom_call.1} parent=1 // pred_fallthru
      _
    // Predicated region
    $region22: #{tpu_custom_call.1} parent=1 // pred_check
      _
    $region23: #{tpu_custom_call.1} parent=1 // pred_check_branch
      %52 = sbr.rel (0) target = $region25
    $region24: #{tpu_custom_call.1} parent=1 // pred_region
      %53 = dma.done [#allocation6], 2304
    $region25: #{tpu_custom_call.1} parent=1 // pred_fallthru
      _
    %v54 = vld [vmem:[#allocation2] sm:$0xff]
    %v55 = vld [vmem:[#allocation5] sm:$0xff]
    %v56 = vld [vmem:[#allocation5 + $0x8] sm:$0xff]
    %v57 = vld [vmem:[#allocation5 + $0x10] sm:$0xff]
    %v58 = vld [vmem:[#allocation5 + $0x18] sm:$0xff]
    %v59 = vld [vmem:[#allocation7] sm:$0xff]
    %v60 = vld [vmem:[#allocation7 + $0x8] sm:$0xff]
    %v61 = vld [vmem:[#allocation7 + $0x10] sm:$0xff]
    %v62 = vld [vmem:[#allocation7 + $0x18] sm:$0xff]
    %v63 = vld [vmem:[#allocation7 + $0x20] sm:$0xff]
    %v64 = vld [vmem:[#allocation7 + $0x28] sm:$0xff]
    %v65 = vld [vmem:[#allocation7 + $0x30] sm:$0xff]
    %v66 = vld [vmem:[#allocation7 + $0x38] sm:$0xff]
    %v67 = vld [vmem:[#allocation7 + $0x40] sm:$0xff]
    %v68 = vld [vmem:[#allocation7 + $0x48] sm:$0xff]
    %v69 = vld [vmem:[#allocation7 + $0x50] sm:$0xff]
    %v70 = vld [vmem:[#allocation7 + $0x58] sm:$0xff]
    %v71 = vld [vmem:[#allocation7 + $0x60] sm:$0xff]
    %v72 = vld [vmem:[#allocation7 + $0x68] sm:$0xff]
    %v73 = vld [vmem:[#allocation7 + $0x70] sm:$0xff]
    %v74 = vld [vmem:[#allocation7 + $0x78] sm:$0xff]
    %v75 = vld [vmem:[#allocation7 + $0x80] sm:$0xff]
    %v76 = vld [vmem:[#allocation7 + $0x88] sm:$0x1]
    %v77 = vld [vmem:[#allocation7 + $0x89] sm:$0x1]
    %v78 = vld [vmem:[#allocation7 + $0x8a] sm:$0x1]
    %v79 = vlaneseq
    %v80 = vshrl.u32 %v79, 7
    %v81 = vsub.s32 0, %v80
    %v82 = vrot.slane %v76, %v81
    %vm83 = vcmask 261120
    %v85 = vsel %vm83, %v54, 0
    %87 = vmatprep.subr.mxu0 0.0
    %88 = vmatpush1.msra.mxu0 %v55
    %89 = vmatprep.subr.mxu0 0.0
    %90 = vmatpush1.msra.mxu0 %v56
    %91 = vmatprep.subr.mxu0 0.0
    %92 = vmatpush1.msra.mxu0 %v57
    %93 = vmatprep.subr.mxu0 0.0
    %94 = vmatpush1.msra.mxu0 %v58
    %95 = vmatprep.subr.mxu0 0.0
    %96 = vmatpush1.msra.mxu0 0.0
    %97 = vmatprep.subr.mxu0 0.0
    %98 = vmatpush1.msra.mxu0 0.0
    %99 = vmatprep.subr.mxu0 0.0
    %100 = vmatpush1.msra.mxu0 0.0
    %101 = vmatprep.subr.mxu0 0.0
    %102 = vmatpush1.msra.mxu0 0.0
    %103 = vmatprep.subr.mxu0 0.0
    %104 = vmatpush1.msra.mxu0 0.0
    %105 = vmatprep.subr.mxu0 0.0
    %106 = vmatpush1.msra.mxu0 0.0
    %107 = vmatprep.subr.mxu0 0.0
    %108 = vmatpush1.msra.mxu0 0.0
    %109 = vmatprep.subr.mxu0 0.0
    %110 = vmatpush1.msra.mxu0 0.0
    %111 = vmatprep.subr.mxu0 0.0
    %112 = vmatpush1.msra.mxu0 0.0
    %113 = vmatprep.subr.mxu0 0.0
    %114 = vmatpush1.msra.mxu0 0.0
    %115 = vmatprep.subr.mxu0 0.0
    %116 = vmatpush1.msra.mxu0 0.0
    %117 = vmatprep.subr.mxu0 0.0
    %118 = vmatpush1.msra.mxu0 0.0
    %119 = vmatprep.subr.mxu0 0.0
    %120 = vmatpush1.msra.mxu0 0.0
    %121 = vmatprep.subr.mxu0 0.0
    %122 = vmatpush1.msra.mxu0 0.0
    %123 = vmatprep.subr.mxu0 0.0
    %124 = vmatpush1.msra.mxu0 0.0
    %125 = vmatprep.subr.mxu0 0.0
    %126 = vmatpush1.msra.mxu0 0.0
    %127 = vmatprep.subr.mxu0 0.0
    %128 = vmatpush1.msra.mxu0 0.0
    %129 = vmatprep.subr.mxu0 0.0
    %130 = vmatpush1.msra.mxu0 0.0
    %131 = vmatprep.subr.mxu0 0.0
    %132 = vmatpush1.msra.mxu0 0.0
    %133 = vmatprep.subr.mxu0 0.0
    %134 = vmatpush1.msra.mxu0 0.0
    %135 = vmatprep.subr.mxu0 0.0
    %136 = vmatpush1.msra.mxu0 0.0
    %137 = vmatprep.subr.mxu0 0.0
    %138 = vmatpush1.msra.mxu0 0.0
    %139 = vmatprep.subr.mxu0 0.0
    %140 = vmatpush1.msra.mxu0 0.0
    %141 = vmatprep.subr.mxu0 0.0
    %142 = vmatpush1.msra.mxu0 0.0
    %143 = vmatprep.subr.mxu0 0.0
    %144 = vmatpush1.msra.mxu0 0.0
    %145 = vmatprep.subr.mxu0 0.0
    %146 = vmatpush1.msra.mxu0 0.0
    %147 = vmatprep.subr.mxu0 0.0
    %148 = vmatpush1.msra.mxu0 0.0
    %149 = vmatprep.subr.mxu0 0.0
    %150 = vmatpush1.msra.mxu0 0.0
    %151 = vmatprep.mubr.f32.mxu0 0.0
    %152 = vmatmul.mubr.f32.gmra.mrb[0].mxu0 %v85
    %v153 = vpop.f32.mrb[0].mxu0
    %v154 = vadd.f32 %v82, %v153
    %v155 = vpop.f32.mrb[0].mxu0
    %156 = vdwg.mxu0
    %v157 = vmax.f32 %v154, 0.0
    %v158 = vlaneseq
    %v159 = vshrl.u32 %v158, 7
    %v160 = vsub.s32 0, %v159
    %v161 = vrot.slane %v77, %v160
    %162 = vmatprep.subr.mxu0 0.0
    %163 = vmatpush1.msra.mxu0 %v59
    %164 = vmatprep.subr.mxu0 0.0
    %165 = vmatpush1.msra.mxu0 %v60
    %166 = vmatprep.subr.mxu0 0.0
    %167 = vmatpush1.msra.mxu0 %v61
    %168 = vmatprep.subr.mxu0 0.0
    %169 = vmatpush1.msra.mxu0 %v62
    %170 = vmatprep.subr.mxu0 0.0
    %171 = vmatpush1.msra.mxu0 %v63
    %172 = vmatprep.subr.mxu0 0.0
    %173 = vmatpush1.msra.mxu0 %v64
    %174 = vmatprep.subr.mxu0 0.0
    %175 = vmatpush1.msra.mxu0 %v65
    %176 = vmatprep.subr.mxu0 0.0
    %177 = vmatpush1.msra.mxu0 %v66
    %178 = vmatprep.subr.mxu0 0.0
    %179 = vmatpush1.msra.mxu0 %v67
    %180 = vmatprep.subr.mxu0 0.0
    %181 = vmatpush1.msra.mxu0 %v68
    %182 = vmatprep.subr.mxu0 0.0
    %183 = vmatpush1.msra.mxu0 %v69
    %184 = vmatprep.subr.mxu0 0.0
    %185 = vmatpush1.msra.mxu0 %v70
    %186 = vmatprep.subr.mxu0 0.0
    %187 = vmatpush1.msra.mxu0 %v71
    %188 = vmatprep.subr.mxu0 0.0
    %189 = vmatpush1.msra.mxu0 %v72
    %190 = vmatprep.subr.mxu0 0.0
    %191 = vmatpush1.msra.mxu0 %v73
    %192 = vmatprep.subr.mxu0 0.0
    %193 = vmatpush1.msra.mxu0 %v74
    %194 = vmatprep.subr.mxu0 0.0
    %195 = vmatpush1.msra.mxu0 0.0
    %196 = vmatprep.subr.mxu0 0.0
    %197 = vmatpush1.msra.mxu0 0.0
    %198 = vmatprep.subr.mxu0 0.0
    %199 = vmatpush1.msra.mxu0 0.0
    %200 = vmatprep.subr.mxu0 0.0
    %201 = vmatpush1.msra.mxu0 0.0
    %202 = vmatprep.subr.mxu0 0.0
    %203 = vmatpush1.msra.mxu0 0.0
    %204 = vmatprep.subr.mxu0 0.0
    %205 = vmatpush1.msra.mxu0 0.0
    %206 = vmatprep.subr.mxu0 0.0
    %207 = vmatpush1.msra.mxu0 0.0
    %208 = vmatprep.subr.mxu0 0.0
    %209 = vmatpush1.msra.mxu0 0.0
    %210 = vmatprep.subr.mxu0 0.0
    %211 = vmatpush1.msra.mxu0 0.0
    %212 = vmatprep.subr.mxu0 0.0
    %213 = vmatpush1.msra.mxu0 0.0
    %214 = vmatprep.subr.mxu0 0.0
    %215 = vmatpush1.msra.mxu0 0.0
    %216 = vmatprep.subr.mxu0 0.0
    %217 = vmatpush1.msra.mxu0 0.0
    %218 = vmatprep.subr.mxu0 0.0
    %219 = vmatpush1.msra.mxu0 0.0
    %220 = vmatprep.subr.mxu0 0.0
    %221 = vmatpush1.msra.mxu0 0.0
    %222 = vmatprep.subr.mxu0 0.0
    %223 = vmatpush1.msra.mxu0 0.0
    %224 = vmatprep.subr.mxu0 0.0
    %225 = vmatpush1.msra.mxu0 0.0
    %226 = vmatprep.mubr.f32.mxu0 0.0
    %227 = vmatmul.mubr.f32.gmra.mrb[0].mxu0 %v157
    %v228 = vpop.f32.mrb[0].mxu0
    %v229 = vadd.f32 %v161, %v228
    %v230 = vpop.f32.mrb[0].mxu0
    %231 = vdwg.mxu0
    %v232 = vmax.f32 %v229, 0.0
    %s234 = vtos %v78
    %v235 = vstv %s234
    %237 = vmatprep.subr.mxu0 0.0
    %238 = vmatpush1.xpose.msra.mxu0 %v232
    %239 = vmatprep.subr.mxu0 0.0
    %240 = vmatpush1.xpose.msra.mxu0 0.0
    %241 = vmatprep.subr.mxu0 0.0
    %242 = vmatpush1.xpose.msra.mxu0 0.0
    %243 = vmatprep.subr.mxu0 0.0
    %244 = vmatpush1.xpose.msra.mxu0 0.0
    %245 = vmatprep.subr.mxu0 0.0
    %246 = vmatpush1.xpose.msra.mxu0 0.0
    %247 = vmatprep.subr.mxu0 0.0
    %248 = vmatpush1.xpose.msra.mxu0 0.0
    %249 = vmatprep.subr.mxu0 0.0
    %250 = vmatpush1.xpose.msra.mxu0 0.0
    %251 = vmatprep.subr.mxu0 0.0
    %252 = vmatpush1.xpose.msra.mxu0 0.0
    %253 = vmatprep.subr.mxu0 0.0
    %254 = vmatpush1.xpose.msra.mxu0 0.0
    %255 = vmatprep.subr.mxu0 0.0
    %256 = vmatpush1.xpose.msra.mxu0 0.0
    %257 = vmatprep.subr.mxu0 0.0
    %258 = vmatpush1.xpose.msra.mxu0 0.0
    %259 = vmatprep.subr.mxu0 0.0
    %260 = vmatpush1.xpose.msra.mxu0 0.0
    %261 = vmatprep.subr.mxu0 0.0
    %262 = vmatpush1.xpose.msra.mxu0 0.0
    %263 = vmatprep.subr.mxu0 0.0
    %264 = vmatpush1.xpose.msra.mxu0 0.0
    %265 = vmatprep.subr.mxu0 0.0
    %266 = vmatpush1.xpose.msra.mxu0 0.0
    %267 = vmatprep.subr.mxu0 0.0
    %268 = vmatpush1.xpose.msra.mxu0 0.0
    %269 = vmatprep.subr.mxu0 0.0
    %270 = vmatpush1.xpose.msra.mxu0 0.0
    %271 = vmatprep.subr.mxu0 0.0
    %272 = vmatpush1.xpose.msra.mxu0 0.0
    %273 = vmatprep.subr.mxu0 0.0
    %274 = vmatpush1.xpose.msra.mxu0 0.0
    %275 = vmatprep.subr.mxu0 0.0
    %276 = vmatpush1.xpose.msra.mxu0 0.0
    %277 = vmatprep.subr.mxu0 0.0
    %278 = vmatpush1.xpose.msra.mxu0 0.0
    %279 = vmatprep.subr.mxu0 0.0
    %280 = vmatpush1.xpose.msra.mxu0 0.0
    %281 = vmatprep.subr.mxu0 0.0
    %282 = vmatpush1.xpose.msra.mxu0 0.0
    %283 = vmatprep.subr.mxu0 0.0
    %284 = vmatpush1.xpose.msra.mxu0 0.0
    %285 = vmatprep.subr.mxu0 0.0
    %286 = vmatpush1.xpose.msra.mxu0 0.0
    %287 = vmatprep.subr.mxu0 0.0
    %288 = vmatpush1.xpose.msra.mxu0 0.0
    %289 = vmatprep.subr.mxu0 0.0
    %290 = vmatpush1.xpose.msra.mxu0 0.0
    %291 = vmatprep.subr.mxu0 0.0
    %292 = vmatpush1.xpose.msra.mxu0 0.0
    %293 = vmatprep.subr.mxu0 0.0
    %294 = vmatpush1.xpose.msra.mxu0 0.0
    %295 = vmatprep.subr.mxu0 0.0
    %296 = vmatpush1.xpose.msra.mxu0 0.0
    %297 = vmatprep.subr.mxu0 0.0
    %298 = vmatpush1.xpose.msra.mxu0 0.0
    %299 = vmatprep.subr.mxu0 0.0
    %300 = vmatpush1.xpose.msra.mxu0 0.0
    %301 = vmatprep.mubr.f32.mxu0 0.0
    %302 = vmatmul.mubr.f32.gmra.mrb[0].mxu0 %v75
    %v303 = vpop.f32.mrb[0].mxu0
    %v304 = vadd.f32 %v235, %v303
    %v305 = vpop.f32.mrb[0].mxu0
    %306 = vdwg.mxu0
    %vm307 = vcmask 64512
    %308 = vst.msk [vmem:[#allocation8] sm:$0xff] %vm307, %v304
    // Predicated region
    $region26: #{tpu_custom_call.1} parent=1 // pred_check
      _
    $region27: #{tpu_custom_call.1} parent=1 // pred_check_branch
      %310 = sbr.rel (0) target = $region29
    $region28: #{tpu_custom_call.1} parent=1 // pred_region
      %s312 = ssub.s32 128, 128
      %313 = vsyncadd [#allocation4], %s312
      %s315 = sshll.u32 [#allocation8], 4
      %s316 = int_to_ptr.vmem [resolvable:$true] %s315
      %318 = dma.vmem_to_hbm [thread:$0]  %s316, 128, %s3, [#allocation4]
    $region29: #{tpu_custom_call.1} parent=1 // pred_fallthru
      _
    // Predicated region
    $region30: #{tpu_custom_call.1} parent=1 // pred_check
      _
    $region31: #{tpu_custom_call.1} parent=1 // pred_check_branch
      %320 = sbr.rel (0) target = $region33
    $region32: #{tpu_custom_call.1} parent=1 // pred_region
      %321 = dma.done [#allocation4], 128
    $region33: #{tpu_custom_call.1} parent=1 // pred_fallthru
      _
    %322 = vsyncpa [#allocation3], 1
    %323 = vsyncpa [#allocation6], 1
    %324 = vsyncpa [#allocation4], 1

</llo_original>
